<compile_context>
chip_gen: v7x
topology: tpu7x:2x2x1
jax: 0.10.0
libtpu: 0.0.40
codegen_flags: <defaults>
</compile_context>

<pallas_src>
import functools
import math

import jax
import jax.numpy as jnp
from jax import lax
from jax.experimental import pallas as pl
from jax.experimental.pallas import tpu as pltpu

d_k = d_v = 64
_NEG_FILL = -1000000000.0  # exact masked_fill value used by the PyTorch module


# --------------------------------------------------------------------------------------
# Kernels
# --------------------------------------------------------------------------------------

def _sdpa_kernel(q_ref, k_ref, v_ref, mask_ref, ctx_ref, attn_ref, *, mask_is_2d):
    """Single-pass SDPA tile (full Sk resident).  Returns both ctx and attn.

    q_ref:    (HB, TQ, dk)   -- 1/sqrt(d_k) already folded in, operand dtype
    k_ref:    (HB, Sk, dk)
    v_ref:    (HB, Sk, dv)
    mask_ref: (TQ, Sk) int8 if mask_is_2d else (HB, TQ, Sk) int8; nonzero => masked
    """
    scores = jnp.einsum("bqd,bkd->bqk", q_ref[...], k_ref[...],
                        preferred_element_type=jnp.float32)
    mask = mask_ref[...]
    if mask_is_2d:
        mask = mask[None]
    scores = jnp.where(mask != 0, _NEG_FILL, scores)

    # Numerically stable softmax over the key axis (exact reciprocal so the returned
    # probabilities sum to 1 per row, like the PyTorch module).
    m = jnp.max(scores, axis=-1, keepdims=True)
    e = jnp.exp(scores - m)
    denom = jnp.sum(e, axis=-1, keepdims=True)
    attn = e * pl.reciprocal(denom)

    ctx = jnp.einsum("bqk,bkd->bqd", attn.astype(v_ref.dtype), v_ref[...],
                     preferred_element_type=jnp.float32)
    ctx_ref[...] = ctx.astype(ctx_ref.dtype)
    attn_ref[...] = attn.astype(attn_ref.dtype)


def _sdpa_flash_kernel(q_ref, k_ref, v_ref, mask_ref, ctx_ref,
                       m_sc, l_sc, acc_sc, *, mask_is_2d, block_k, kv_len, kv_guard):
    """Flash-style SDPA (online softmax over an Sk grid axis).  ctx only."""
    kv = pl.program_id(2)

    @pl.when(kv == 0)
    def _():
        m_sc[...] = jnp.full_like(m_sc, -jnp.inf)
        l_sc[...] = jnp.zeros_like(l_sc)
        acc_sc[...] = jnp.zeros_like(acc_sc)

    s = jnp.einsum("bqd,bkd->bqk", q_ref[...], k_ref[...],
                   preferred_element_type=jnp.float32)
    mask = mask_ref[...]
    if mask_is_2d:
        mask = mask[None]
    s = jnp.where(mask != 0, _NEG_FILL, s)
    if kv_guard:
        # Out-of-range key columns of a partial last Sk tile contribute exactly zero.
        col = kv * block_k + lax.broadcasted_iota(jnp.int32, s.shape, 2)
        s = jnp.where(col >= kv_len, -jnp.inf, s)

    m_new = jnp.maximum(m_sc[...], jnp.max(s, axis=-1, keepdims=True))
    alpha = jnp.exp(m_sc[...] - m_new)
    p = jnp.exp(s - m_new)
    l_sc[...] = alpha * l_sc[...] + jnp.sum(p, axis=-1, keepdims=True)
    acc_sc[...] = alpha * acc_sc[...] + jnp.einsum(
        "bqk,bkd->bqd", p.astype(v_ref.dtype), v_ref[...],
        preferred_element_type=jnp.float32)
    m_sc[...] = m_new

    @pl.when(kv == pl.num_programs(2) - 1)
    def _():
        ctx_ref[...] = (acc_sc[...] *
                        pl.reciprocal(l_sc[...], approx=True)).astype(ctx_ref.dtype)


# --------------------------------------------------------------------------------------
# Tile / VMEM heuristics
# --------------------------------------------------------------------------------------

def _vmem_budget():
    """(vmem_limit_bytes, per-tile byte budget), generation-aware."""
    try:
        cap = pltpu.get_tpu_info().vmem_capacity_bytes
    except Exception:  # noqa: BLE001 - fall back to the most conservative assumption
        cap = 64 * 1024 * 1024
    if cap <= 64 * 1024 * 1024:                 # v7x-class: 64 MiB per TensorCore
        return 32 * 1024 * 1024, 20 * 1024 * 1024
    return 64 * 1024 * 1024, 32 * 1024 * 1024   # v5e / v6e: 128 MiB physical VMEM


def _single_footprint(hb, tq, Sk, dk, dv, op_b, ctx_b, attn_b, mask_per_head):
    kv = hb * Sk * (dk + dv) * op_b                      # resident K, V blocks
    q = hb * tq * dk * op_b
    ctx = hb * tq * dv * ctx_b
    mask = (hb if mask_per_head else 1) * tq * Sk        # int8
    aout = hb * tq * Sk * attn_b                         # attn writeback block
    live = hb * tq * Sk * 12                             # scores + exp + attn (f32 live set)
    return 2 * (kv + q + ctx + mask + aout) + live       # 2x for double-buffered I/O


def _flash_footprint(hb, tq, tk, dk, dv, op_b, ctx_b, mask_per_head):
    kv = hb * tk * (dk + dv) * op_b
    q = hb * tq * dk * op_b
    ctx = hb * tq * dv * ctx_b
    mask = (hb if mask_per_head else 1) * tq * tk
    live = hb * tq * tk * 8 + hb * tq * (dv + 2) * 4     # s & p f32 + acc/m/l scratch
    return 2 * (kv + q + ctx + mask) + live


def _pick_tile(dim, cap, fits):
    """Largest tile: full dim if it fits and <= cap, else a multiple of 128."""
    if dim <= cap and fits(dim):
        return dim
    for t in (512, 384, 256, 128):
        if t <= cap and t < dim and fits(t):
            return t
    return dim if dim <= 128 else 128


def _pick_heads(BH, fits):
    """Heads per grid step: only amortizes the ~0.35us/step overhead for tiny Sq."""
    for hb in range(min(BH, 8), 1, -1):
        if BH % hb == 0 and fits(hb):
            return hb
    return 1


def _choose_single_tiles(BH, Sq, Sk, dk, dv, op_b, ctx_b, attn_b, mask_per_head, budget):
    fp = lambda hb, tq: _single_footprint(hb, tq, Sk, dk, dv, op_b, ctx_b,
                                          attn_b, mask_per_head)
    tq = _pick_tile(Sq, 512, lambda t: fp(1, t) <= budget)
    hb = 1
    if Sq <= 64:  # tiny Sq: batch heads per step purely to cut grid-step overhead
        hb = _pick_heads(BH, lambda h: fp(h, tq) <= budget)
    return hb, tq


def _choose_flash_tiles(BH, Sq, Sk, dk, dv, op_b, ctx_b, mask_per_head, budget):
    fp = lambda hb, tq, tk: _flash_footprint(hb, tq, tk, dk, dv, op_b, ctx_b,
                                             mask_per_head)
    tq0 = min(Sq, 256)
    tk = _pick_tile(Sk, 512, lambda t: fp(1, tq0, t) <= budget)
    tq = _pick_tile(Sq, 256, lambda t: fp(1, t, tk) <= budget)
    hb = 1
    if Sq <= 64:
        hb = _pick_heads(BH, lambda h: fp(h, tq, tk) <= budget)
    return hb, tq, tk


# --------------------------------------------------------------------------------------
# Public wrapper
# --------------------------------------------------------------------------------------

def scaled_dot_product_attention(Q, K, V, attn_mask, *, return_attn=True,
                                 mxu_dtype=jnp.bfloat16, attn_dtype=None):
    """SDPA matching the PyTorch module.

    Q:[B,H,Sq,dk]  K:[B,H,Sk,dk]  V:[B,H,Sk,dv]
    attn_mask: bool/int, True/nonzero => masked.  Either [B,H,Sq,Sk] (or broadcastable
    4-D) or a shared [Sq,Sk] mask (fetched once per q-tile, reused across heads).
    mxu_dtype: MXU operand dtype (default bf16; None => exact f32, slow on v5e).
    attn_dtype: dtype of the returned attention probabilities (default: Q.dtype).
    return_attn=False uses the flash (online-softmax) kernel and skips the attn stream.
    """
    B, H, Sq, dk = Q.shape
    Sk = K.shape[2]
    dv = V.shape[3]
    BH = B * H

    op_dtype = jnp.dtype(mxu_dtype) if mxu_dtype is not None else jnp.dtype(Q.dtype)
    out_dtype = jnp.dtype(Q.dtype)
    a_dtype = jnp.dtype(attn_dtype) if attn_dtype is not None else out_dtype

    # Fold the 1/sqrt(d_k) scale into Q and cast operands once, in the wrapper.
    scale = 1.0 / math.sqrt(d_k)
    q = (Q.astype(jnp.float32) * scale).astype(op_dtype).reshape(BH, Sq, dk)
    k = K.astype(op_dtype).reshape(BH, Sk, dk)
    v = V.astype(op_dtype).reshape(BH, Sk, dv)

    if attn_mask.ndim == 2:                                   # shared (Sq,Sk) mask
        mask = attn_mask.astype(jnp.int8)
        mask_is_2d = True
    else:                                                     # per-(B,H) mask
        mask = (jnp.broadcast_to(attn_mask, (B, H, Sq, Sk))
                .reshape(BH, Sq, Sk).astype(jnp.int8))
        mask_is_2d = False

    vmem_limit, budget = _vmem_budget()
    op_b = op_dtype.itemsize
    ctx_b = out_dtype.itemsize
    ctx_shape = jax.ShapeDtypeStruct((BH, Sq, dv), out_dtype)

    if return_attn:
        HB, TQ = _choose_single_tiles(BH, Sq, Sk, dk, dv, op_b, ctx_b,
                                      a_dtype.itemsize, not mask_is_2d, budget)
        grid = (BH // HB, pl.cdiv(Sq, TQ))
        if mask_is_2d:
            mask_spec = pl.BlockSpec((TQ, Sk), lambda b, qi: (qi, 0))
        else:
            mask_spec = pl.BlockSpec((HB, TQ, Sk), lambda b, qi: (b, qi, 0))
        in_specs = [
            pl.BlockSpec((HB, TQ, dk), lambda b, qi: (b, qi, 0)),
            pl.BlockSpec((HB, Sk, dk), lambda b, qi: (b, 0, 0)),   # K resident per head-group
            pl.BlockSpec((HB, Sk, dv), lambda b, qi: (b, 0, 0)),   # V resident per head-group
            mask_spec,
        ]
        out_specs = [
            pl.BlockSpec((HB, TQ, dv), lambda b, qi: (b, qi, 0)),
            pl.BlockSpec((HB, TQ, Sk), lambda b, qi: (b, qi, 0)),
        ]
        attn_shape = jax.ShapeDtypeStruct((BH, Sq, Sk), a_dtype)
        ctx, attn = pl.pallas_call(
            functools.partial(_sdpa_kernel, mask_is_2d=mask_is_2d),
            out_shape=(ctx_shape, attn_shape),
            grid_spec=pltpu.PrefetchScalarGridSpec(
                num_scalar_prefetch=0, grid=grid,
                in_specs=in_specs, out_specs=out_specs),
            compiler_params=pltpu.CompilerParams(
                dimension_semantics=("parallel", "arbitrary"),   # keep qi sequential
                vmem_limit_bytes=vmem_limit),
        )(q, k, v, mask)
        return ctx.reshape(B, H, Sq, dv), attn.reshape(B, H, Sq, Sk)

    # ctx-only: flash-style online softmax.  VMEM use is independent of Sk and the big
    # (BH,Sq,Sk) attention writeback is dropped (largest HBM stream of the kernel).
    HB, TQ, TK = _choose_flash_tiles(BH, Sq, Sk, dk, dv, op_b, ctx_b,
                                     not mask_is_2d, budget)
    grid = (BH // HB, pl.cdiv(Sq, TQ), pl.cdiv(Sk, TK))
    if mask_is_2d:
        mask_spec = pl.BlockSpec((TQ, TK), lambda b, qi, ki: (qi, ki))
    else:
        mask_spec = pl.BlockSpec((HB, TQ, TK), lambda b, qi, ki: (b, qi, ki))
    in_specs = [
        pl.BlockSpec((HB, TQ, dk), lambda b, qi, ki: (b, qi, 0)),
        pl.BlockSpec((HB, TK, dk), lambda b, qi, ki: (b, ki, 0)),
        pl.BlockSpec((HB, TK, dv), lambda b, qi, ki: (b, ki, 0)),
        mask_spec,
    ]
    ctx = pl.pallas_call(
        functools.partial(_sdpa_flash_kernel, mask_is_2d=mask_is_2d,
                          block_k=TK, kv_len=Sk, kv_guard=(Sk % TK != 0)),
        out_shape=ctx_shape,
        grid_spec=pltpu.PrefetchScalarGridSpec(
            num_scalar_prefetch=0, grid=grid,
            in_specs=in_specs,
            out_specs=pl.BlockSpec((HB, TQ, dv), lambda b, qi, ki: (b, qi, 0)),
            scratch_shapes=[pltpu.VMEM((HB, TQ, 1), jnp.float32),   # running max m
                            pltpu.VMEM((HB, TQ, 1), jnp.float32),   # running sum l
                            pltpu.VMEM((HB, TQ, dv), jnp.float32)]),  # acc
        compiler_params=pltpu.CompilerParams(
            dimension_semantics=("parallel", "parallel", "arbitrary"),
            vmem_limit_bytes=vmem_limit),
    )(q, k, v, mask)
    return ctx.reshape(B, H, Sq, dv), None


# --------------------------------------------------------------------------------------
# Reference + self-test
# --------------------------------------------------------------------------------------

def _reference(Q, K, V, attn_mask):
    scores = jnp.einsum("bhqd,bhkd->bhqk", Q, K) / math.sqrt(d_k)
    scores = jnp.where(attn_mask, _NEG_FILL, scores)
    attn = jax.nn.softmax(scores, axis=-1)
    ctx = jnp.einsum("bhqk,bhkd->bhqd", attn, V)
    return ctx, attn


if __name__ == "__main__":
    key = jax.random.PRNGKey(0)

    def make_qkv(B, H, Sq, Sk, salt):
        ks = jax.random.split(jax.random.fold_in(key, salt), 3)
        Q = jax.random.normal(ks[0], (B, H, Sq, d_k), dtype=jnp.float32)
        K = jax.random.normal(ks[1], (B, H, Sk, d_k), dtype=jnp.float32)
        V = jax.random.normal(ks[2], (B, H, Sk, d_v), dtype=jnp.float32)
        return Q, K, V

    def causal(Sq, Sk):
        return jnp.triu(jnp.ones((Sq, Sk), dtype=bool), k=1)   # True => masked

    def check(got, want, atol, rtol, what):
        assert got.shape == want.shape, f"{what}: shape {got.shape} vs {want.shape}"
        assert jnp.allclose(got, want, atol=atol, rtol=rtol), f"{what}: mismatch"

    # --- small shape, full (B,H,Sq,Sk) mask: head-batched single-pass path -------------
    B, H, Sq, Sk = 2, 2, 8, 8
    Q, K, V = make_qkv(B, H, Sq, Sk, salt=0)
    M4 = jnp.broadcast_to(causal(Sq, Sk), (B, H, Sq, Sk))
    ctx_ref, attn_ref = _reference(Q, K, V, M4)

    ctx, attn = scaled_dot_product_attention(Q, K, V, M4)             # bf16 MXU default
    jax.block_until_ready((ctx, attn))
    check(ctx, ctx_ref, 3e-2, 3e-2, "ctx(bf16)")
    check(attn, attn_ref, 3e-2, 3e-2, "attn(bf16)")

    ctx_x, attn_x = scaled_dot_product_attention(Q, K, V, M4, mxu_dtype=None)  # exact f32
    jax.block_until_ready((ctx_x, attn_x))
    check(ctx_x, ctx_ref, 2e-3, 2e-3, "ctx(f32)")
    check(attn_x, attn_ref, 2e-3, 2e-3, "attn(f32)")

    ctx_f, _ = scaled_dot_product_attention(Q, K, V, M4, return_attn=False)    # flash path
    jax.block_until_ready(ctx_f)
    check(ctx_f, ctx_ref, 3e-2, 3e-2, "ctx(flash,bf16)")

    # --- larger sequence, shared (Sq,Sk) mask: Sq-tiled path, broadcast mask stream ----
    B, H, Sq, Sk = 1, 2, 256, 256
    Q2, K2, V2 = make_qkv(B, H, Sq, Sk, salt=1)
    M2 = causal(Sq, Sk)
    ctx2_ref, attn2_ref = _reference(Q2, K2, V2, jnp.broadcast_to(M2, (B, H, Sq, Sk)))

    ctx2, attn2 = scaled_dot_product_attention(Q2, K2, V2, M2, mxu_dtype=None)
    jax.block_until_ready((ctx2, attn2))
    check(ctx2, ctx2_ref, 2e-3, 2e-3, "ctx2(f32)")
    check(attn2, attn2_ref, 2e-3, 2e-3, "attn2(f32)")

    ctx2b, attn2b = scaled_dot_product_attention(Q2, K2, V2, M2)      # bf16 default
    jax.block_until_ready((ctx2b, attn2b))
    check(ctx2b, ctx2_ref, 1e-1, 1e-1, "ctx2(bf16)")

    ctx2f, _ = scaled_dot_product_attention(Q2, K2, V2, M2, return_attn=False,
                                            mxu_dtype=None)          # flash, exact ops
    jax.block_until_ready(ctx2f)
    check(ctx2f, ctx2_ref, 2e-3, 2e-3, "ctx2(flash,f32)")

    print("KERNEL_OK")
</pallas_src>

<mosaic_0001>
module attributes {stable_mosaic.version = 11 : i64} {
  func.func @_sdpa_kernel(%arg0: i32, %arg1: i32, %arg2: memref<4x8x64xbf16, #tpu.memory_space<vmem>>, %arg3: memref<4x8x64xbf16, #tpu.memory_space<vmem>>, %arg4: memref<4x8x64xbf16, #tpu.memory_space<vmem>>, %arg5: memref<4x8x8xi8, #tpu.memory_space<vmem>>, %arg6: memref<4x8x64xf32, #tpu.memory_space<vmem>>, %arg7: memref<4x8x8xf32, #tpu.memory_space<vmem>>) attributes {dimension_semantics = [#tpu.dimension_semantics<parallel>, #tpu.dimension_semantics<arbitrary>], iteration_bounds = array<i64: 1, 1>, scalar_prefetch = 0 : i64, scratch_operands = 0 : i64, tpu.core_type = #tpu.core_type<tc>, window_params = [{transform_indices = @transform_0, window_bounds = array<i64: 4, 8, 64>}, {transform_indices = @transform_1, window_bounds = array<i64: 4, 8, 64>}, {transform_indices = @transform_2, window_bounds = array<i64: 4, 8, 64>}, {transform_indices = @transform_3, window_bounds = array<i64: 4, 8, 8>}, {transform_indices = @transform_4, window_bounds = array<i64: 4, 8, 64>}, {transform_indices = @transform_5, window_bounds = array<i64: 4, 8, 8>}]} {
    %c0 = arith.constant 0 : index
    %c0_0 = arith.constant 0 : index
    %c0_1 = arith.constant 0 : index
    %0 = vector.load %arg2[%c0, %c0_0, %c0_1] : memref<4x8x64xbf16, #tpu.memory_space<vmem>>, vector<4x8x64xbf16>
    %c0_2 = arith.constant 0 : index
    %c0_3 = arith.constant 0 : index
    %c0_4 = arith.constant 0 : index
    %1 = vector.load %arg3[%c0_2, %c0_3, %c0_4] : memref<4x8x64xbf16, #tpu.memory_space<vmem>>, vector<4x8x64xbf16>
    "tpu.trace_start"() <{level = 10 : i32, message = "bqd,bkd->bqk"}> : () -> ()
    %cst = arith.constant dense<0.000000e+00> : vector<4x8x8xf32>
    %2 = tpu.matmul %0, %1, %cst {dimension_numbers = #tpu.dot_dimension_numbers<[2], [2], [1], [1], [0, 0, 0, 1, 1, 1], [0], [0]>} : vector<4x8x64xbf16>, vector<4x8x64xbf16>, vector<4x8x8xf32> -> vector<4x8x8xf32>
    "tpu.trace_stop"() : () -> ()
    %c0_5 = arith.constant 0 : index
    %c0_6 = arith.constant 0 : index
    %c0_7 = arith.constant 0 : index
    %3 = vector.load %arg5[%c0_5, %c0_6, %c0_7] : memref<4x8x8xi8, #tpu.memory_space<vmem>>, vector<4x8x8xi8>
    %c0_i8 = arith.constant 0 : i8
    %4 = vector.broadcast %c0_i8 : i8 to vector<4x8x8xi8>
    %5 = arith.cmpi ne, %3, %4 : vector<4x8x8xi8>
    %cst_8 = arith.constant -1.000000e+09 : f32
    %6 = vector.broadcast %cst_8 : f32 to vector<4x8x8xf32>
    %7 = arith.select %5, %6, %2 : vector<4x8x8xi1>, vector<4x8x8xf32>
    %cst_9 = arith.constant dense<0xFF800000> : vector<4x8xf32>
    %8 = vector.multi_reduction <maximumf>, %7, %cst_9 [2] : vector<4x8x8xf32> to vector<4x8xf32>
    %9 = vector.shape_cast %8 : vector<4x8xf32> to vector<4x8x1xf32>
    %10 = vector.broadcast %9 : vector<4x8x1xf32> to vector<4x8x8xf32>
    %11 = arith.subf %7, %10 : vector<4x8x8xf32>
    %12 = math.exp %11 : vector<4x8x8xf32>
    %cst_10 = arith.constant dense<0.000000e+00> : vector<4x8xf32>
    %13 = vector.multi_reduction <add>, %12, %cst_10 [2] : vector<4x8x8xf32> to vector<4x8xf32>
    %14 = vector.shape_cast %13 : vector<4x8xf32> to vector<4x8x1xf32>
    %15 = tpu.reciprocal %14 : vector<4x8x1xf32> -> vector<4x8x1xf32>
    %16 = vector.broadcast %15 : vector<4x8x1xf32> to vector<4x8x8xf32>
    %17 = arith.mulf %12, %16 : vector<4x8x8xf32>
    %18 = arith.truncf %17 : vector<4x8x8xf32> to vector<4x8x8xbf16>
    %c0_11 = arith.constant 0 : index
    %c0_12 = arith.constant 0 : index
    %c0_13 = arith.constant 0 : index
    %19 = vector.load %arg4[%c0_11, %c0_12, %c0_13] : memref<4x8x64xbf16, #tpu.memory_space<vmem>>, vector<4x8x64xbf16>
    "tpu.trace_start"() <{level = 10 : i32, message = "bqk,bkd->bqd"}> : () -> ()
    %cst_14 = arith.constant dense<0.000000e+00> : vector<4x8x64xf32>
    %20 = tpu.matmul %18, %19, %cst_14 {dimension_numbers = #tpu.dot_dimension_numbers<[2], [1], [1], [2], [0, 0, 0, 1, 1, 2], [0], [0]>} : vector<4x8x8xbf16>, vector<4x8x64xbf16>, vector<4x8x64xf32> -> vector<4x8x64xf32>
    "tpu.trace_stop"() : () -> ()
    %c0_15 = arith.constant 0 : index
    %c0_16 = arith.constant 0 : index
    %c0_17 = arith.constant 0 : index
    %21 = vector.load %arg6[%c0_15, %c0_16, %c0_17] : memref<4x8x64xf32, #tpu.memory_space<vmem>>, vector<4x8x64xf32>
    tpu.vector_store %arg6[%c0_15, %c0_16, %c0_17], %20 {strides = array<i32>} : memref<4x8x64xf32, #tpu.memory_space<vmem>>, vector<4x8x64xf32>,
    %c0_18 = arith.constant 0 : index
    %c0_19 = arith.constant 0 : index
    %c0_20 = arith.constant 0 : index
    %22 = vector.load %arg7[%c0_18, %c0_19, %c0_20] : memref<4x8x8xf32, #tpu.memory_space<vmem>>, vector<4x8x8xf32>
    tpu.vector_store %arg7[%c0_18, %c0_19, %c0_20], %17 {strides = array<i32>} : memref<4x8x8xf32, #tpu.memory_space<vmem>>, vector<4x8x8xf32>,
    return
  }
  func.func @transform_0(%arg0: i32, %arg1: i32) -> (i32, i32, i32) {
    %c0_i32 = arith.constant 0 : i32
    %c0_i32_0 = arith.constant 0 : i32
    return %arg0, %arg1, %c0_i32 : i32, i32, i32
  }
  func.func @transform_1(%arg0: i32, %arg1: i32) -> (i32, i32, i32) {
    %c0_i32 = arith.constant 0 : i32
    %c0_i32_0 = arith.constant 0 : i32
    %c0_i32_1 = arith.constant 0 : i32
    return %arg0, %c0_i32, %c0_i32_0 : i32, i32, i32
  }
  func.func @transform_2(%arg0: i32, %arg1: i32) -> (i32, i32, i32) {
    %c0_i32 = arith.constant 0 : i32
    %c0_i32_0 = arith.constant 0 : i32
    %c0_i32_1 = arith.constant 0 : i32
    return %arg0, %c0_i32, %c0_i32_0 : i32, i32, i32
  }
  func.func @transform_3(%arg0: i32, %arg1: i32) -> (i32, i32, i32) {
    %c0_i32 = arith.constant 0 : i32
    %c0_i32_0 = arith.constant 0 : i32
    return %arg0, %arg1, %c0_i32 : i32, i32, i32
  }
  func.func @transform_4(%arg0: i32, %arg1: i32) -> (i32, i32, i32) {
    %c0_i32 = arith.constant 0 : i32
    %c0_i32_0 = arith.constant 0 : i32
    return %arg0, %arg1, %c0_i32 : i32, i32, i32
  }
  func.func @transform_5(%arg0: i32, %arg1: i32) -> (i32, i32, i32) {
    %c0_i32 = arith.constant 0 : i32
    %c0_i32_0 = arith.constant 0 : i32
    return %arg0, %arg1, %c0_i32 : i32, i32, i32
  }
}

</mosaic_0001>

<llo_original>
// kernel: tpu_custom_call.1
$region0: #{tpu_custom_call.1}
  #allocation0 [shape = 'u32[]', space=smem, size = 0x4, offset = 0x4, fixed_abs, tag = 'smem constant byte address 0x4 - core index']
  #allocation1 [shape = 'u32[144,128]{1,0:T(1,128)}', space=vmem, size = 0x12000, scoped, tag = 'internal scratch']
  %s0 = inlined_call_operand.hbm [shape: bf16[4,8,64], index: 0, kind: input, shape index: {}]
  %s1 = inlined_call_operand.hbm [shape: bf16[4,8,64], index: 1, kind: input, shape index: {}]
  %s2 = inlined_call_operand.hbm [shape: bf16[4,8,64], index: 2, kind: input, shape index: {}]
  %s3 = inlined_call_operand.vmem [shape: s8[4,8,8], index: 3, kind: input, shape index: {}]
  %s4 = inlined_call_operand.hbm [shape: f32[4,8,64], index: 4, kind: output, shape index: {0}]
  %s5 = inlined_call_operand.hbm [shape: f32[4,8,8], index: 5, kind: output, shape index: {1}]
  %6 = xla_tuple %s4, %s5
  %s7 = sld [smem:[#allocation0]]
  $region46: #{tpu_custom_call.1} parent=0
    _
  %s9 = ssub.s32 1, %s7
  %s10 = scalar_select 0, %s9, %s7
  $region1: #{tpu_custom_call.1} parent=0
    #allocation2 [shape = 'u8[8192]{0}', space=vmem, size = 0x2000, scoped, tag = 'input window, operand 0, single buffered']
    #allocation3 [shape = 's32[1]{0}', space=sflag, size = 0x4, scoped, tag = 'scoped memory for tpu_custom_call.1']
    #allocation4 [shape = 's32[1]{0}', space=sflag, size = 0x4, scoped, tag = 'scoped memory for tpu_custom_call.1']
    #allocation5 [shape = 'u8[8192]{0}', space=vmem, size = 0x2000, scoped, tag = 'input window, operand 1, single buffered']
    #allocation6 [shape = 's32[1]{0}', space=sflag, size = 0x4, scoped, tag = 'scoped memory for tpu_custom_call.1']
    #allocation7 [shape = 'u8[8192]{0}', space=vmem, size = 0x2000, scoped, tag = 'input window, operand 2, single buffered']
    #allocation8 [shape = 'u8[16384]{0}', space=vmem, size = 0x4000, scoped, tag = 'output window, operand 0, single buffered']
    #allocation9 [shape = 'u8[16384]{0}', space=vmem, size = 0x4000, scoped, tag = 'output window, operand 1, single buffered']
    #allocation10 [shape = 's32[1]{0}', space=sflag, size = 0x4, scoped, tag = 'scoped memory for tpu_custom_call.1']
    %11 = vsyncpa [#allocation3], 0
    %12 = vsyncpa [#allocation6], 0
    %13 = vsyncpa [#allocation4], 0
    %14 = vsyncpa [#allocation10], 0
    // Predicated region
    $region2: #{tpu_custom_call.1} parent=1 // pred_check
      _
    $region3: #{tpu_custom_call.1} parent=1 // pred_check_branch
      %16 = sbr.rel (0) target = $region5
    $region4: #{tpu_custom_call.1} parent=1 // pred_region
      %s18 = ssub.s32 256, 256
      %19 = vsyncadd [#allocation3], %s18
      %s20 = sshll.u32 [#allocation2], 4
      %s21 = int_to_ptr.vmem [resolvable:$true] %s20
      %26 = dma.hbm_to_vmem [thread:$0]  %s0, 256, %s21, [#allocation3], 64, 64, 4
    $region5: #{tpu_custom_call.1} parent=1 // pred_fallthru
      _
    // Predicated region
    $region6: #{tpu_custom_call.1} parent=1 // pred_check
      _
    $region7: #{tpu_custom_call.1} parent=1 // pred_check_branch
      %28 = sbr.rel (0) target = $region9
    $region8: #{tpu_custom_call.1} parent=1 // pred_region
      %s30 = ssub.s32 256, 256
      %31 = vsyncadd [#allocation6], %s30
      %s32 = sshll.u32 [#allocation5], 4
      %s33 = int_to_ptr.vmem [resolvable:$true] %s32
      %38 = dma.hbm_to_vmem [thread:$0]  %s1, 256, %s33, [#allocation6], 64, 64, 4
    $region9: #{tpu_custom_call.1} parent=1 // pred_fallthru
      _
    // Predicated region
    $region10: #{tpu_custom_call.1} parent=1 // pred_check
      _
    $region11: #{tpu_custom_call.1} parent=1 // pred_check_branch
      %40 = sbr.rel (0) target = $region13
    $region12: #{tpu_custom_call.1} parent=1 // pred_region
      %s42 = ssub.s32 256, 256
      %43 = vsyncadd [#allocation6], %s42
      %s44 = sshll.u32 [#allocation7], 4
      %s45 = int_to_ptr.vmem [resolvable:$true] %s44
      %50 = dma.hbm_to_vmem [thread:$0]  %s2, 256, %s45, [#allocation6], 64, 64, 4
    $region13: #{tpu_custom_call.1} parent=1 // pred_fallthru
      _
    // Predicated region
    $region14: #{tpu_custom_call.1} parent=1 // pred_check
      _
    $region15: #{tpu_custom_call.1} parent=1 // pred_check_branch
      %52 = sbr.rel (0) target = $region17
    $region16: #{tpu_custom_call.1} parent=1 // pred_region
      _
    $region17: #{tpu_custom_call.1} parent=1 // pred_fallthru
      _
    // Predicated region
    $region18: #{tpu_custom_call.1} parent=1 // pred_check
      _
    $region19: #{tpu_custom_call.1} parent=1 // pred_check_branch
      %54 = sbr.rel (0) target = $region21
    $region20: #{tpu_custom_call.1} parent=1 // pred_region
      %55 = dma.done [#allocation3], 256
    $region21: #{tpu_custom_call.1} parent=1 // pred_fallthru
      _
    // Predicated region
    $region22: #{tpu_custom_call.1} parent=1 // pred_check
      _
    $region23: #{tpu_custom_call.1} parent=1 // pred_check_branch
      %57 = sbr.rel (0) target = $region25
    $region24: #{tpu_custom_call.1} parent=1 // pred_region
      %58 = dma.done [#allocation6], 256
    $region25: #{tpu_custom_call.1} parent=1 // pred_fallthru
      _
    // Predicated region
    $region26: #{tpu_custom_call.1} parent=1 // pred_check
      _
    $region27: #{tpu_custom_call.1} parent=1 // pred_check_branch
      %60 = sbr.rel (0) target = $region29
    $region28: #{tpu_custom_call.1} parent=1 // pred_region
      %61 = dma.done [#allocation6], 256
    $region29: #{tpu_custom_call.1} parent=1 // pred_fallthru
      _
    %v65 = vld [vmem:[#allocation2] sm:$0xf]
    %v66 = vld [vmem:[#allocation2 + $0x4] sm:$0xf]
    %v67 = vld [vmem:[#allocation2 + $0x8] sm:$0xf]
    %v68 = vld [vmem:[#allocation2 + $0xc] sm:$0xf]
    %v69 = vld [vmem:[#allocation5] sm:$0xf]
    %v70 = vld [vmem:[#allocation5 + $0x4] sm:$0xf]
    %v71 = vld [vmem:[#allocation5 + $0x8] sm:$0xf]
    %v72 = vld [vmem:[#allocation5 + $0xc] sm:$0xf]
    %vm73 = vcmask 523264
    %v75 = vsel %vm73, %v65, 0
    %v78 = vsel %vm73, %v69, 0
    %80 = vmatprep.subr.bf16.mxu0 0
    %81 = vmatpush1.bf16.xpose.msra.mxu0 %v78
    %82 = vmatprep.subr.bf16.mxu0 0
    %83 = vmatpush1.bf16.xpose.msra.mxu0 0
    %84 = vmatprep.subr.bf16.mxu0 0
    %85 = vmatpush1.bf16.xpose.msra.mxu0 0
    %86 = vmatprep.subr.bf16.mxu0 0
    %87 = vmatpush1.bf16.xpose.msra.mxu0 0
    %88 = vmatprep.subr.bf16.mxu0 0
    %89 = vmatpush1.bf16.xpose.msra.mxu0 0
    %90 = vmatprep.subr.bf16.mxu0 0
    %91 = vmatpush1.bf16.xpose.msra.mxu0 0
    %92 = vmatprep.subr.bf16.mxu0 0
    %93 = vmatpush1.bf16.xpose.msra.mxu0 0
    %94 = vmatprep.subr.bf16.mxu0 0
    %95 = vmatpush1.bf16.xpose.msra.mxu0 0
    %96 = vmatprep.subr.bf16.mxu0 0
    %97 = vmatpush1.bf16.xpose.msra.mxu0 0
    %98 = vmatprep.subr.bf16.mxu0 0
    %99 = vmatpush1.bf16.xpose.msra.mxu0 0
    %100 = vmatprep.subr.bf16.mxu0 0
    %101 = vmatpush1.bf16.xpose.msra.mxu0 0
    %102 = vmatprep.subr.bf16.mxu0 0
    %103 = vmatpush1.bf16.xpose.msra.mxu0 0
    %104 = vmatprep.subr.bf16.mxu0 0
    %105 = vmatpush1.bf16.xpose.msra.mxu0 0
    %106 = vmatprep.subr.bf16.mxu0 0
    %107 = vmatpush1.bf16.xpose.msra.mxu0 0
    %108 = vmatprep.subr.bf16.mxu0 0
    %109 = vmatpush1.bf16.xpose.msra.mxu0 0
    %110 = vmatprep.subr.bf16.mxu0 0
    %111 = vmatpush1.bf16.xpose.msra.mxu0 0
    %112 = vmatprep.mubr.bf16.mxu0 0
    %113 = vmatmul.mubr.bf16.gmra.mrb[0].mxu0 %v75
    %v114 = vpop.f32.mrb[0].mxu0
    %v115 = vadd.f32 0.0, %v114
    %v116 = vpop.f32.mrb[0].mxu0
    %v117 = vpop.f32.mrb[0].mxu0
    %v118 = vpop.f32.mrb[0].mxu0
    %119 = vdwg.mxu0
    %v121 = vsel %vm73, %v66, 0
    %v124 = vsel %vm73, %v70, 0
    %126 = vmatprep.subr.bf16.mxu0 0
    %127 = vmatpush1.bf16.xpose.msra.mxu0 %v124
    %128 = vmatprep.subr.bf16.mxu0 0
    %129 = vmatpush1.bf16.xpose.msra.mxu0 0
    %130 = vmatprep.subr.bf16.mxu0 0
    %131 = vmatpush1.bf16.xpose.msra.mxu0 0
    %132 = vmatprep.subr.bf16.mxu0 0
    %133 = vmatpush1.bf16.xpose.msra.mxu0 0
    %134 = vmatprep.subr.bf16.mxu0 0
    %135 = vmatpush1.bf16.xpose.msra.mxu0 0
    %136 = vmatprep.subr.bf16.mxu0 0
    %137 = vmatpush1.bf16.xpose.msra.mxu0 0
    %138 = vmatprep.subr.bf16.mxu0 0
    %139 = vmatpush1.bf16.xpose.msra.mxu0 0
    %140 = vmatprep.subr.bf16.mxu0 0
    %141 = vmatpush1.bf16.xpose.msra.mxu0 0
    %142 = vmatprep.subr.bf16.mxu0 0
    %143 = vmatpush1.bf16.xpose.msra.mxu0 0
    %144 = vmatprep.subr.bf16.mxu0 0
    %145 = vmatpush1.bf16.xpose.msra.mxu0 0
    %146 = vmatprep.subr.bf16.mxu0 0
    %147 = vmatpush1.bf16.xpose.msra.mxu0 0
    %148 = vmatprep.subr.bf16.mxu0 0
    %149 = vmatpush1.bf16.xpose.msra.mxu0 0
    %150 = vmatprep.subr.bf16.mxu0 0
    %151 = vmatpush1.bf16.xpose.msra.mxu0 0
    %152 = vmatprep.subr.bf16.mxu0 0
    %153 = vmatpush1.bf16.xpose.msra.mxu0 0
    %154 = vmatprep.subr.bf16.mxu0 0
    %155 = vmatpush1.bf16.xpose.msra.mxu0 0
    %156 = vmatprep.subr.bf16.mxu0 0
    %157 = vmatpush1.bf16.xpose.msra.mxu0 0
    %158 = vmatprep.mubr.bf16.mxu0 0
    %159 = vmatmul.mubr.bf16.gmra.mrb[0].mxu0 %v121
    %v160 = vpop.f32.mrb[0].mxu0
    %v161 = vadd.f32 0.0, %v160
    %v162 = vpop.f32.mrb[0].mxu0
    %v163 = vpop.f32.mrb[0].mxu0
    %v164 = vpop.f32.mrb[0].mxu0
    %165 = vdwg.mxu0
    %v167 = vsel %vm73, %v67, 0
    %v170 = vsel %vm73, %v71, 0
    %172 = vmatprep.subr.bf16.mxu0 0
    %173 = vmatpush1.bf16.xpose.msra.mxu0 %v170
    %174 = vmatprep.subr.bf16.mxu0 0
    %175 = vmatpush1.bf16.xpose.msra.mxu0 0
    %176 = vmatprep.subr.bf16.mxu0 0
    %177 = vmatpush1.bf16.xpose.msra.mxu0 0
    %178 = vmatprep.subr.bf16.mxu0 0
    %179 = vmatpush1.bf16.xpose.msra.mxu0 0
    %180 = vmatprep.subr.bf16.mxu0 0
    %181 = vmatpush1.bf16.xpose.msra.mxu0 0
    %182 = vmatprep.subr.bf16.mxu0 0
    %183 = vmatpush1.bf16.xpose.msra.mxu0 0
    %184 = vmatprep.subr.bf16.mxu0 0
    %185 = vmatpush1.bf16.xpose.msra.mxu0 0
    %186 = vmatprep.subr.bf16.mxu0 0
    %187 = vmatpush1.bf16.xpose.msra.mxu0 0
    %188 = vmatprep.subr.bf16.mxu0 0
    %189 = vmatpush1.bf16.xpose.msra.mxu0 0
    %190 = vmatprep.subr.bf16.mxu0 0
    %191 = vmatpush1.bf16.xpose.msra.mxu0 0
    %192 = vmatprep.subr.bf16.mxu0 0
    %193 = vmatpush1.bf16.xpose.msra.mxu0 0
    %194 = vmatprep.subr.bf16.mxu0 0
    %195 = vmatpush1.bf16.xpose.msra.mxu0 0
    %196 = vmatprep.subr.bf16.mxu0 0
    %197 = vmatpush1.bf16.xpose.msra.mxu0 0
    %198 = vmatprep.subr.bf16.mxu0 0
    %199 = vmatpush1.bf16.xpose.msra.mxu0 0
    %200 = vmatprep.subr.bf16.mxu0 0
    %201 = vmatpush1.bf16.xpose.msra.mxu0 0
    %202 = vmatprep.subr.bf16.mxu0 0
    %203 = vmatpush1.bf16.xpose.msra.mxu0 0
    %204 = vmatprep.mubr.bf16.mxu0 0
    %205 = vmatmul.mubr.bf16.gmra.mrb[0].mxu0 %v167
    %v206 = vpop.f32.mrb[0].mxu0
    %v207 = vadd.f32 0.0, %v206
    %v208 = vpop.f32.mrb[0].mxu0
    %v209 = vpop.f32.mrb[0].mxu0
    %v210 = vpop.f32.mrb[0].mxu0
    %211 = vdwg.mxu0
    %v213 = vsel %vm73, %v68, 0
    %v216 = vsel %vm73, %v72, 0
    %218 = vmatprep.subr.bf16.mxu0 0
    %219 = vmatpush1.bf16.xpose.msra.mxu0 %v216
    %220 = vmatprep.subr.bf16.mxu0 0
    %221 = vmatpush1.bf16.xpose.msra.mxu0 0
    %222 = vmatprep.subr.bf16.mxu0 0
    %223 = vmatpush1.bf16.xpose.msra.mxu0 0
    %224 = vmatprep.subr.bf16.mxu0 0
    %225 = vmatpush1.bf16.xpose.msra.mxu0 0
    %226 = vmatprep.subr.bf16.mxu0 0
    %227 = vmatpush1.bf16.xpose.msra.mxu0 0
    %228 = vmatprep.subr.bf16.mxu0 0
    %229 = vmatpush1.bf16.xpose.msra.mxu0 0
    %230 = vmatprep.subr.bf16.mxu0 0
    %231 = vmatpush1.bf16.xpose.msra.mxu0 0
    %232 = vmatprep.subr.bf16.mxu0 0
    %233 = vmatpush1.bf16.xpose.msra.mxu0 0
    %234 = vmatprep.subr.bf16.mxu0 0
    %235 = vmatpush1.bf16.xpose.msra.mxu0 0
    %236 = vmatprep.subr.bf16.mxu0 0
    %237 = vmatpush1.bf16.xpose.msra.mxu0 0
    %238 = vmatprep.subr.bf16.mxu0 0
    %239 = vmatpush1.bf16.xpose.msra.mxu0 0
    %240 = vmatprep.subr.bf16.mxu0 0
    %241 = vmatpush1.bf16.xpose.msra.mxu0 0
    %242 = vmatprep.subr.bf16.mxu0 0
    %243 = vmatpush1.bf16.xpose.msra.mxu0 0
    %244 = vmatprep.subr.bf16.mxu0 0
    %245 = vmatpush1.bf16.xpose.msra.mxu0 0
    %246 = vmatprep.subr.bf16.mxu0 0
    %247 = vmatpush1.bf16.xpose.msra.mxu0 0
    %248 = vmatprep.subr.bf16.mxu0 0
    %249 = vmatpush1.bf16.xpose.msra.mxu0 0
    %250 = vmatprep.mubr.bf16.mxu0 0
    %251 = vmatmul.mubr.bf16.gmra.mrb[0].mxu0 %v213
    %v252 = vpop.f32.mrb[0].mxu0
    %v253 = vadd.f32 0.0, %v252
    %v254 = vpop.f32.mrb[0].mxu0
    %v255 = vpop.f32.mrb[0].mxu0
    %v256 = vpop.f32.mrb[0].mxu0
    %257 = vdwg.mxu0
    %v258 = vld [vmem:[%s3] sm:$0x3]
    %v259 = vld [vmem:[%s3 + $0x2] sm:$0x3]
    %v260 = vld [vmem:[%s3 + $0x4] sm:$0x3]
    %v261 = vld [vmem:[%s3 + $0x6] sm:$0x3]
    %vm262 = vnez %v258
    %vm263 = vnez %v259
    %vm264 = vnez %v260
    %vm265 = vnez %v261
    %v266 = vsel %vm262, 16843009, 0
    %v267 = vsel %vm263, 16843009, 0
    %v268 = vsel %vm264, 16843009, 0
    %v269 = vsel %vm265, 16843009, 0
    %v270 = vunpack.c.0.s8 %v266
    %v271 = vunpack.c.0.s8 %v267
    %v272 = vunpack.c.0.s8 %v268
    %v273 = vunpack.c.0.s8 %v269
    %vm274 = vcmp.ne.s32.totalorder %v270, 0
    %vm275 = vcmp.ne.s32.totalorder %v271, 0
    %vm276 = vcmp.ne.s32.totalorder %v272, 0
    %vm277 = vcmp.ne.s32.totalorder %v273, 0
    %v278 = vsel %vm274, -1e+09, %v115
    %v279 = vsel %vm275, -1e+09, %v161
    %v280 = vsel %vm276, -1e+09, %v207
    %v281 = vsel %vm277, -1e+09, %v253
    %vm282 = vcmask 64512
    %v283 = vsel %vm282, %v278, -inf
    %284 = vmax.xlane.f32.xlu0 %v283
    %v285 = vpop.xlane.xlu0 %284
    %v286 = vsel %vm282, %v279, -inf
    %287 = vmax.xlane.f32.xlu0 %v286
    %v288 = vpop.xlane.xlu0 %287
    %v289 = vsel %vm282, %v280, -inf
    %290 = vmax.xlane.f32.xlu0 %v289
    %v291 = vpop.xlane.xlu0 %290
    %v292 = vsel %vm282, %v281, -inf
    %293 = vmax.xlane.f32.xlu0 %v292
    %v294 = vpop.xlane.xlu0 %293
    %v295 = vsub.f32 %v278, %v285
    %v296 = vsub.f32 %v279, %v288
    %v297 = vsub.f32 %v280, %v291
    %v298 = vsub.f32 %v281, %v294
    %v299 = vmul.f32 %v295, 1.442695
    %v300 = vpow.pop %v299
    %v301 = vmul.f32 %v296, 1.442695
    %v302 = vpow.pop %v301
    %v303 = vmul.f32 %v297, 1.442695
    %v304 = vpow.pop %v303
    %v305 = vmul.f32 %v298, 1.442695
    %v306 = vpow.pop %v305
    %v307 = vsel %vm282, %v300, 0.0
    %308 = vadd.xlane.f32.xlu0 %v307
    %v309 = vpop.xlane.xlu0 %308
    %v310 = vsel %vm282, %v302, 0.0
    %311 = vadd.xlane.f32.xlu0 %v310
    %v312 = vpop.xlane.xlu0 %311
    %v313 = vsel %vm282, %v304, 0.0
    %314 = vadd.xlane.f32.xlu0 %v313
    %v315 = vpop.xlane.xlu0 %314
    %v316 = vsel %vm282, %v306, 0.0
    %317 = vadd.xlane.f32.xlu0 %v316
    %v318 = vpop.xlane.xlu0 %317
    %v319 = vrcp.pop %v309
    %v320 = vrcp.pop %v312
    %v321 = vrcp.pop %v315
    %v322 = vrcp.pop %v318
    %v323 = vmul.f32 %v300, %v319
    %v324 = vmul.f32 %v302, %v320
    %v325 = vmul.f32 %v304, %v321
    %v326 = vmul.f32 %v306, %v322
    %v327 = vpack.c.bf16 %v323, %v323
    %v328 = vpack.c.bf16 %v324, %v324
    %v329 = vpack.c.bf16 %v325, %v325
    %v330 = vpack.c.bf16 %v326, %v326
    %v331 = vld [vmem:[#allocation7] sm:$0xf]
    %v332 = vld [vmem:[#allocation7 + $0x4] sm:$0xf]
    %v333 = vld [vmem:[#allocation7 + $0x8] sm:$0xf]
    %v334 = vld [vmem:[#allocation7 + $0xc] sm:$0xf]
    %v336 = vsel %vm282, %v327, 0
    %vm338 = vcmask 1043456
    %v340 = vsel %vm338, %v331, 0
    %342 = vmatprep.subr.bf16.mxu0 0
    %343 = vmatpush1.bf16.msra.mxu0 %v340
    %344 = vmatprep.subr.bf16.mxu0 0
    %345 = vmatpush1.bf16.msra.mxu0 0
    %346 = vmatprep.subr.bf16.mxu0 0
    %347 = vmatpush1.bf16.msra.mxu0 0
    %348 = vmatprep.subr.bf16.mxu0 0
    %349 = vmatpush1.bf16.msra.mxu0 0
    %350 = vmatprep.subr.bf16.mxu0 0
    %351 = vmatpush1.bf16.msra.mxu0 0
    %352 = vmatprep.subr.bf16.mxu0 0
    %353 = vmatpush1.bf16.msra.mxu0 0
    %354 = vmatprep.subr.bf16.mxu0 0
    %355 = vmatpush1.bf16.msra.mxu0 0
    %356 = vmatprep.subr.bf16.mxu0 0
    %357 = vmatpush1.bf16.msra.mxu0 0
    %358 = vmatprep.subr.bf16.mxu0 0
    %359 = vmatpush1.bf16.msra.mxu0 0
    %360 = vmatprep.subr.bf16.mxu0 0
    %361 = vmatpush1.bf16.msra.mxu0 0
    %362 = vmatprep.subr.bf16.mxu0 0
    %363 = vmatpush1.bf16.msra.mxu0 0
    %364 = vmatprep.subr.bf16.mxu0 0
    %365 = vmatpush1.bf16.msra.mxu0 0
    %366 = vmatprep.subr.bf16.mxu0 0
    %367 = vmatpush1.bf16.msra.mxu0 0
    %368 = vmatprep.subr.bf16.mxu0 0
    %369 = vmatpush1.bf16.msra.mxu0 0
    %370 = vmatprep.subr.bf16.mxu0 0
    %371 = vmatpush1.bf16.msra.mxu0 0
    %372 = vmatprep.subr.bf16.mxu0 0
    %373 = vmatpush1.bf16.msra.mxu0 0
    %374 = vmatprep.mubr.bf16.mxu0 0
    %375 = vmatmul.mubr.bf16.gmra.mrb[0].mxu0 %v336
    %v376 = vpop.f32.mrb[0].mxu0
    %v377 = vadd.f32 0.0, %v376
    %v378 = vpop.f32.mrb[0].mxu0
    %v379 = vpop.f32.mrb[0].mxu0
    %v380 = vpop.f32.mrb[0].mxu0
    %381 = vdwg.mxu0
    %v383 = vsel %vm282, %v328, 0
    %v386 = vsel %vm338, %v332, 0
    %388 = vmatprep.subr.bf16.mxu0 0
    %389 = vmatpush1.bf16.msra.mxu0 %v386
    %390 = vmatprep.subr.bf16.mxu0 0
    %391 = vmatpush1.bf16.msra.mxu0 0
    %392 = vmatprep.subr.bf16.mxu0 0
    %393 = vmatpush1.bf16.msra.mxu0 0
    %394 = vmatprep.subr.bf16.mxu0 0
    %395 = vmatpush1.bf16.msra.mxu0 0
    %396 = vmatprep.subr.bf16.mxu0 0
    %397 = vmatpush1.bf16.msra.mxu0 0
    %398 = vmatprep.subr.bf16.mxu0 0
    %399 = vmatpush1.bf16.msra.mxu0 0
    %400 = vmatprep.subr.bf16.mxu0 0
    %401 = vmatpush1.bf16.msra.mxu0 0
    %402 = vmatprep.subr.bf16.mxu0 0
    %403 = vmatpush1.bf16.msra.mxu0 0
    %404 = vmatprep.subr.bf16.mxu0 0
    %405 = vmatpush1.bf16.msra.mxu0 0
    %406 = vmatprep.subr.bf16.mxu0 0
    %407 = vmatpush1.bf16.msra.mxu0 0
    %408 = vmatprep.subr.bf16.mxu0 0
    %409 = vmatpush1.bf16.msra.mxu0 0
    %410 = vmatprep.subr.bf16.mxu0 0
    %411 = vmatpush1.bf16.msra.mxu0 0
    %412 = vmatprep.subr.bf16.mxu0 0
    %413 = vmatpush1.bf16.msra.mxu0 0
    %414 = vmatprep.subr.bf16.mxu0 0
    %415 = vmatpush1.bf16.msra.mxu0 0
    %416 = vmatprep.subr.bf16.mxu0 0
    %417 = vmatpush1.bf16.msra.mxu0 0
    %418 = vmatprep.subr.bf16.mxu0 0
    %419 = vmatpush1.bf16.msra.mxu0 0
    %420 = vmatprep.mubr.bf16.mxu0 0
    %421 = vmatmul.mubr.bf16.gmra.mrb[0].mxu0 %v383
    %v422 = vpop.f32.mrb[0].mxu0
    %v423 = vadd.f32 0.0, %v422
    %v424 = vpop.f32.mrb[0].mxu0
    %v425 = vpop.f32.mrb[0].mxu0
    %v426 = vpop.f32.mrb[0].mxu0
    %427 = vdwg.mxu0
    %v429 = vsel %vm282, %v329, 0
    %v432 = vsel %vm338, %v333, 0
    %434 = vmatprep.subr.bf16.mxu0 0
    %435 = vmatpush1.bf16.msra.mxu0 %v432
    %436 = vmatprep.subr.bf16.mxu0 0
    %437 = vmatpush1.bf16.msra.mxu0 0
    %438 = vmatprep.subr.bf16.mxu0 0
    %439 = vmatpush1.bf16.msra.mxu0 0
    %440 = vmatprep.subr.bf16.mxu0 0
    %441 = vmatpush1.bf16.msra.mxu0 0
    %442 = vmatprep.subr.bf16.mxu0 0
    %443 = vmatpush1.bf16.msra.mxu0 0
    %444 = vmatprep.subr.bf16.mxu0 0
    %445 = vmatpush1.bf16.msra.mxu0 0
    %446 = vmatprep.subr.bf16.mxu0 0
    %447 = vmatpush1.bf16.msra.mxu0 0
    %448 = vmatprep.subr.bf16.mxu0 0
    %449 = vmatpush1.bf16.msra.mxu0 0
    %450 = vmatprep.subr.bf16.mxu0 0
    %451 = vmatpush1.bf16.msra.mxu0 0
    %452 = vmatprep.subr.bf16.mxu0 0
    %453 = vmatpush1.bf16.msra.mxu0 0
    %454 = vmatprep.subr.bf16.mxu0 0
    %455 = vmatpush1.bf16.msra.mxu0 0
    %456 = vmatprep.subr.bf16.mxu0 0
    %457 = vmatpush1.bf16.msra.mxu0 0
    %458 = vmatprep.subr.bf16.mxu0 0
    %459 = vmatpush1.bf16.msra.mxu0 0
    %460 = vmatprep.subr.bf16.mxu0 0
    %461 = vmatpush1.bf16.msra.mxu0 0
    %462 = vmatprep.subr.bf16.mxu0 0
    %463 = vmatpush1.bf16.msra.mxu0 0
    %464 = vmatprep.subr.bf16.mxu0 0
    %465 = vmatpush1.bf16.msra.mxu0 0
    %466 = vmatprep.mubr.bf16.mxu0 0
    %467 = vmatmul.mubr.bf16.gmra.mrb[0].mxu0 %v429
    %v468 = vpop.f32.mrb[0].mxu0
    %v469 = vadd.f32 0.0, %v468
    %v470 = vpop.f32.mrb[0].mxu0
    %v471 = vpop.f32.mrb[0].mxu0
    %v472 = vpop.f32.mrb[0].mxu0
    %473 = vdwg.mxu0
    %v475 = vsel %vm282, %v330, 0
    %v478 = vsel %vm338, %v334, 0
    %480 = vmatprep.subr.bf16.mxu0 0
    %481 = vmatpush1.bf16.msra.mxu0 %v478
    %482 = vmatprep.subr.bf16.mxu0 0
    %483 = vmatpush1.bf16.msra.mxu0 0
    %484 = vmatprep.subr.bf16.mxu0 0
    %485 = vmatpush1.bf16.msra.mxu0 0
    %486 = vmatprep.subr.bf16.mxu0 0
    %487 = vmatpush1.bf16.msra.mxu0 0
    %488 = vmatprep.subr.bf16.mxu0 0
    %489 = vmatpush1.bf16.msra.mxu0 0
    %490 = vmatprep.subr.bf16.mxu0 0
    %491 = vmatpush1.bf16.msra.mxu0 0
    %492 = vmatprep.subr.bf16.mxu0 0
    %493 = vmatpush1.bf16.msra.mxu0 0
    %494 = vmatprep.subr.bf16.mxu0 0
    %495 = vmatpush1.bf16.msra.mxu0 0
    %496 = vmatprep.subr.bf16.mxu0 0
    %497 = vmatpush1.bf16.msra.mxu0 0
    %498 = vmatprep.subr.bf16.mxu0 0
    %499 = vmatpush1.bf16.msra.mxu0 0
    %500 = vmatprep.subr.bf16.mxu0 0
    %501 = vmatpush1.bf16.msra.mxu0 0
    %502 = vmatprep.subr.bf16.mxu0 0
    %503 = vmatpush1.bf16.msra.mxu0 0
    %504 = vmatprep.subr.bf16.mxu0 0
    %505 = vmatpush1.bf16.msra.mxu0 0
    %506 = vmatprep.subr.bf16.mxu0 0
    %507 = vmatpush1.bf16.msra.mxu0 0
    %508 = vmatprep.subr.bf16.mxu0 0
    %509 = vmatpush1.bf16.msra.mxu0 0
    %510 = vmatprep.subr.bf16.mxu0 0
    %511 = vmatpush1.bf16.msra.mxu0 0
    %512 = vmatprep.mubr.bf16.mxu0 0
    %513 = vmatmul.mubr.bf16.gmra.mrb[0].mxu0 %v475
    %v514 = vpop.f32.mrb[0].mxu0
    %v515 = vadd.f32 0.0, %v514
    %v516 = vpop.f32.mrb[0].mxu0
    %v517 = vpop.f32.mrb[0].mxu0
    %v518 = vpop.f32.mrb[0].mxu0
    %519 = vdwg.mxu0
    %520 = vst.msk [vmem:[#allocation8] sm:$0xff] %vm73, %v377
    %521 = vst.msk [vmem:[#allocation8 + $0x8] sm:$0xff] %vm73, %v423
    %522 = vst.msk [vmem:[#allocation8 + $0x10] sm:$0xff] %vm73, %v469
    %523 = vst.msk [vmem:[#allocation8 + $0x18] sm:$0xff] %vm73, %v515
    %524 = vst.msk [vmem:[#allocation9] sm:$0xff] %vm282, %v323
    %525 = vst.msk [vmem:[#allocation9 + $0x8] sm:$0xff] %vm282, %v324
    %526 = vst.msk [vmem:[#allocation9 + $0x10] sm:$0xff] %vm282, %v325
    %527 = vst.msk [vmem:[#allocation9 + $0x18] sm:$0xff] %vm282, %v326
    // Predicated region
    $region30: #{tpu_custom_call.1} parent=1 // pred_check
      _
    $region31: #{tpu_custom_call.1} parent=1 // pred_check_branch
      %529 = sbr.rel (0) target = $region33
    $region32: #{tpu_custom_call.1} parent=1 // pred_region
      %s531 = ssub.s32 512, 512
      %532 = vsyncadd [#allocation4], %s531
      %s533 = sshll.u32 [#allocation8], 4
      %s534 = int_to_ptr.vmem [resolvable:$true] %s533
      %539 = dma.vmem_to_hbm [thread:$0]  %s534, 512, %s4, [#allocation4], 128, 128, 8
    $region33: #{tpu_custom_call.1} parent=1 // pred_fallthru
      _
    // Predicated region
    $region34: #{tpu_custom_call.1} parent=1 // pred_check
      _
    $region35: #{tpu_custom_call.1} parent=1 // pred_check_branch
      %541 = sbr.rel (0) target = $region37
    $region36: #{tpu_custom_call.1} parent=1 // pred_region
      %s543 = ssub.s32 512, 512
      %544 = vsyncadd [#allocation10], %s543
      %s545 = sshll.u32 [#allocation9], 4
      %s546 = int_to_ptr.vmem [resolvable:$true] %s545
      %551 = dma.vmem_to_hbm [thread:$0]  %s546, 512, %s5, [#allocation10], 128, 128, 8
    $region37: #{tpu_custom_call.1} parent=1 // pred_fallthru
      _
    // Predicated region
    $region38: #{tpu_custom_call.1} parent=1 // pred_check
      _
    $region39: #{tpu_custom_call.1} parent=1 // pred_check_branch
      %553 = sbr.rel (0) target = $region41
    $region40: #{tpu_custom_call.1} parent=1 // pred_region
      %554 = dma.done [#allocation4], 512
    $region41: #{tpu_custom_call.1} parent=1 // pred_fallthru
      _
    // Predicated region
    $region42: #{tpu_custom_call.1} parent=1 // pred_check
      _
    $region43: #{tpu_custom_call.1} parent=1 // pred_check_branch
      %556 = sbr.rel (0) target = $region45
    $region44: #{tpu_custom_call.1} parent=1 // pred_region
      %557 = dma.done [#allocation10], 512
    $region45: #{tpu_custom_call.1} parent=1 // pred_fallthru
      _
    %558 = vsyncpa [#allocation3], 1
    %559 = vsyncpa [#allocation6], 1
    %560 = vsyncpa [#allocation4], 1
    %561 = vsyncpa [#allocation10], 1

</llo_original>
